<compile_context>
chip_gen: v5e
topology: v5e:2x2
jax: 0.10.0
libtpu: 0.0.40
codegen_flags: <defaults>
</compile_context>

<pallas_src>
import math
import functools

import jax
import jax.numpy as jnp
from jax import lax
from jax.experimental import pallas as pl
from jax.experimental.pallas import tpu as pltpu


def _attention_block_kernel(q_ref, k_ref, v_ref,
                            wq_ref, bq_ref, wk_ref, bk_ref, wv_ref, bv_ref,
                            o_ref, *, bt, sq, sk, d, dkp, dk,
                            flat_proj, matmul_dtype):
    md = matmul_dtype  # None -> all-f32 MXU operands (v5e / tight tolerance)

    def proj(x_ref, s, w_ref, b_ref):
        # Inputs/weights already arrive in `md` (cast in the wrapper), so the
        # MXU sees md operands with an f32 accumulator; bias add is in f32.
        if flat_proj:
            # One big (bt*s, D) @ (D, dkp) MXU matmul (free view: s % 8 == 0).
            y = jnp.dot(x_ref[...].reshape(bt * s, d), w_ref[...],
                        preferred_element_type=jnp.float32)
            y = (y + b_ref[...]).reshape(bt, s, dkp)
        else:
            # Ragged (non-multiple-of-8) sequence lengths: keep the batched 3-D
            # form so Mosaic doesn't materialize full-tile reshape copies.
            y = lax.dot_general(x_ref[...], w_ref[...],
                                dimension_numbers=(((2,), (0,)), ((), ())),
                                preferred_element_type=jnp.float32)
            y = y + b_ref[...]
        # Cast once right after the bias add: halves the VMEM/vreg footprint of
        # the (s, dkp) intermediates on the bf16 path.
        return y if md is None else y.astype(md)

    # 1/sqrt(d_model) is already folded into wq/bq by the wrapper.
    out_q = proj(q_ref, sq, wq_ref, bq_ref)   # (bt, sq, dkp)
    out_k = proj(k_ref, sk, wk_ref, bk_ref)   # (bt, sk, dkp)
    out_v = proj(v_ref, sk, wv_ref, bv_ref)   # (bt, sk, dkp)

    # scores[b, q, k] = sum_d out_q[b, q, d] * out_k[b, k, d]   (no K transpose)
    scores = lax.dot_general(out_q, out_k,
                             dimension_numbers=(((2,), (2,)), ((0,), (0,))),
                             preferred_element_type=jnp.float32)

    # torch nn.Softmax(dim=1) on (B, Sq, Sk): normalize over the QUERY axis.
    # Exact math (no approx reciprocal) -- this path is tolerance-critical.
    m = jnp.max(scores, axis=1, keepdims=True)
    e = jnp.exp(scores - m)
    denom = jnp.sum(e, axis=1, keepdims=True)
    p = e * (1.0 / denom)                      # exact divide only on (bt,1,sk)
    if md is not None:
        p = p.astype(md)

    # out[b, q, d] = sum_k p[b, q, k] * out_v[b, k, d]
    out = lax.dot_general(p, out_v,
                          dimension_numbers=(((2,), (1,)), ((0,), (0,))),
                          preferred_element_type=jnp.float32)

    # Store the unpadded d_k columns directly (avoids a separate XLA slice that
    # would re-read/write the whole padded output buffer).
    if dk != dkp:
        out = out[:, :, :dk]
    o_ref[...] = out.astype(o_ref.dtype)


def attention_block(Q, K, V, wq, bq, wk, bk, wv, bv,
                    *, block_b=None, matmul_dtype=None):
    B, Sq, D = Q.shape
    _, Sk, _ = K.shape
    dk = wq.shape[1]
    out_dtype = Q.dtype

    # Fold the 1/sqrt(d_model) attention scale into the query projection (once).
    scale = 1.0 / math.sqrt(D)
    wq = wq * scale
    bq = bq * scale

    # Zero-pad d_k to a lane-friendly multiple of 128 for the MXU intermediates
    # (exact: padded columns contribute 0 to scores and are sliced off in-kernel
    # before the store, so the output itself stays unpadded).
    dkp = max(128, ((dk + 127) // 128) * 128)
    pad = dkp - dk
    if pad:
        wq = jnp.pad(wq, ((0, 0), (0, pad)))
        wk = jnp.pad(wk, ((0, 0), (0, pad)))
        wv = jnp.pad(wv, ((0, 0), (0, pad)))
        bq = jnp.pad(bq, ((0, 0), (0, pad)))
        bk = jnp.pad(bk, ((0, 0), (0, pad)))
        bv = jnp.pad(bv, ((0, 0), (0, pad)))

    # bf16 (etc.) operands are cast in the wrapper so HBM->VMEM DMAs and the
    # double-buffered input tiles are half-width; biases stay f32 (added to the
    # f32 accumulator inside the kernel).
    if matmul_dtype is not None:
        Q = Q.astype(matmul_dtype)
        K = K.astype(matmul_dtype)
        V = V.astype(matmul_dtype)
        wq = wq.astype(matmul_dtype)
        wk = wk.astype(matmul_dtype)
        wv = wv.astype(matmul_dtype)
    in_sz = jnp.dtype(Q.dtype).itemsize
    w_sz = jnp.dtype(wq.dtype).itemsize
    mm_sz = 2 if matmul_dtype is not None else 4

    # Generation-aware VMEM capacity (128 MiB v5e/v6e, 64 MiB per-TC on v7x).
    try:
        vmem_cap = int(pltpu.get_tpu_info().vmem_capacity_bytes)
        if vmem_cap <= 0:
            vmem_cap = 64 * 1024 * 1024
    except Exception:
        vmem_cap = 64 * 1024 * 1024   # conservative fallback

    # Batch-block: amortize the ~0.35us/step overhead under a gen-aware budget,
    # preferring an EVEN number of grid steps so v7x megacore splits the
    # "parallel" batch axis evenly across its two TensorCores.
    if block_b is None:
        bytes_per_batch = (
            2 * in_sz * (Sq * D + 2 * Sk * D)     # double-buffered Q/K/V tiles
            + 2 * 4 * Sq * dk                     # double-buffered output tile
            + mm_sz * (Sq + 2 * Sk) * dkp         # out_q / out_k / out_v
            + 4 * 3 * Sq * Sk                     # scores / e / p live together (f32)
            + 4 * Sq * dkp)                       # padded attention output (f32)
        budget = max(4 * 1024 * 1024, vmem_cap // 5)
        bt_cap = int(max(1, min(budget // max(bytes_per_batch, 1), B)))
        divisors = [t for t in range(1, bt_cap + 1) if B % t == 0]
        even = [t for t in divisors if (B // t) % 2 == 0]
        block_b = max(even) if even else max(divisors)
    grid_b = B // block_b

    # VMEM estimate including double-buffered I/O, live (Sq,Sk) temporaries and
    # (double-buffered) weights/biases.
    vmem_est = (2 * in_sz * block_b * (Sq * D + 2 * Sk * D)
                + 2 * 4 * block_b * Sq * dk
                + mm_sz * block_b * (Sq + 2 * Sk) * dkp
                + 4 * 3 * block_b * Sq * Sk
                + 4 * block_b * Sq * dkp
                + 2 * 3 * (w_sz * D * dkp + 4 * dkp))
    cp_kwargs = dict(dimension_semantics=("parallel",))
    # v5e's default scoped-VMEM limit is only 16 MiB -> raise it whenever the
    # estimate approaches that, capped at 7/8 of physical VMEM (v7x: 64 MiB).
    if vmem_est > 12 * 1024 * 1024:
        cp_kwargs["vmem_limit_bytes"] = int(min(vmem_est * 5 // 4,
                                                vmem_cap * 7 // 8))

    # Advisory cost estimate so XLA schedules surrounding ops correctly.
    flops = 2 * B * (Sq + 2 * Sk) * D * dkp + 4 * B * Sq * Sk * dkp
    bytes_accessed = (in_sz * B * (Sq + 2 * Sk) * D
                      + 3 * (w_sz * D * dkp + 4 * dkp)
                      + 4 * B * Sq * dk)
    cost = pl.CostEstimate(flops=flops, transcendentals=B * Sq * Sk,
                           bytes_accessed=bytes_accessed)

    # 2-D flattened projections only when the reshape is a free sublane view.
    flat_proj = (Sq % 8 == 0) and (Sk % 8 == 0)

    kernel = functools.partial(
        _attention_block_kernel,
        bt=block_b, sq=Sq, sk=Sk, d=D, dkp=dkp, dk=dk,
        flat_proj=flat_proj, matmul_dtype=matmul_dtype)

    # NOTE: for very long Sk, add a second "arbitrary" grid axis tiling Sk with
    # an f32 output accumulator in scratch (softmax(dim=1) normalizes over the
    # query axis, so each Sk tile's max/sum is local -- no online softmax needed).
    out = pl.pallas_call(
        kernel,
        out_shape=jax.ShapeDtypeStruct((B, Sq, dk), out_dtype),
        grid=(grid_b,),
        in_specs=[
            pl.BlockSpec((block_b, Sq, D), lambda b: (b, 0, 0)),   # Q
            pl.BlockSpec((block_b, Sk, D), lambda b: (b, 0, 0)),   # K
            pl.BlockSpec((block_b, Sk, D), lambda b: (b, 0, 0)),   # V
            pl.BlockSpec((D, dkp), lambda b: (0, 0)),              # Wq (pre-scaled)
            pl.BlockSpec((1, dkp), lambda b: (0, 0)),              # bq (pre-scaled)
            pl.BlockSpec((D, dkp), lambda b: (0, 0)),              # Wk
            pl.BlockSpec((1, dkp), lambda b: (0, 0)),              # bk
            pl.BlockSpec((D, dkp), lambda b: (0, 0)),              # Wv
            pl.BlockSpec((1, dkp), lambda b: (0, 0)),              # bv
        ],
        out_specs=pl.BlockSpec((block_b, Sq, dk), lambda b: (b, 0, 0)),
        compiler_params=pltpu.CompilerParams(**cp_kwargs),
        cost_estimate=cost,
    )(Q, K, V, wq, bq, wk, bk, wv, bv)

    return out


def reference(Q, K, V, wq, bq, wk, bk, wv, bv):
    """Pure-JAX reference mirroring the PyTorch forward exactly."""
    D = Q.shape[-1]
    out_q = Q @ wq + bq
    out_k = K @ wk + bk
    out_v = V @ wv + bv
    scores = (out_q @ jnp.swapaxes(out_k, 1, 2)) / math.sqrt(D)
    p = jax.nn.softmax(scores, axis=1)   # torch Softmax(dim=1)
    return p @ out_v


if __name__ == "__main__":
    # Small shapes consistent with the module: (batch, seq, in_channel)
    B, S, in_channel, out_channel = 2, 8, 32, 16

    key = jax.random.PRNGKey(0)
    kq, kk, kv, kwq, kbq, kwk, kbk, kwv, kbv = jax.random.split(key, 9)

    Q = jax.random.normal(kq, (B, S, in_channel), dtype=jnp.float32)
    K = jax.random.normal(kk, (B, S, in_channel), dtype=jnp.float32)
    V = jax.random.normal(kv, (B, S, in_channel), dtype=jnp.float32)

    # Deterministic parameter init (shapes match nn.Linear(in_channel, out_channel)),
    # stored pre-transposed as (in_channel, out_channel); biases as (1, out_channel).
    bound = 1.0 / math.sqrt(in_channel)
    wq = jax.random.uniform(kwq, (in_channel, out_channel), jnp.float32, -bound, bound)
    bq = jax.random.uniform(kbq, (1, out_channel), jnp.float32, -bound, bound)
    wk = jax.random.uniform(kwk, (in_channel, out_channel), jnp.float32, -bound, bound)
    bk = jax.random.uniform(kbk, (1, out_channel), jnp.float32, -bound, bound)
    wv = jax.random.uniform(kwv, (in_channel, out_channel), jnp.float32, -bound, bound)
    bv = jax.random.uniform(kbv, (1, out_channel), jnp.float32, -bound, bound)

    # matmul_dtype=jnp.bfloat16 is the recommended setting for v6e/v7x MXU
    # throughput in production; keep f32 here so the 1e-3 tolerance check is tight.
    out = attention_block(Q, K, V, wq, bq, wk, bk, wv, bv, matmul_dtype=None)
    out = jax.block_until_ready(out)

    ref = reference(Q, K, V, wq, bq, wk, bk, wv, bv)
    assert out.shape == (B, S, out_channel), out.shape
    err = float(jnp.max(jnp.abs(out - ref)))
    assert jnp.allclose(out, ref, atol=1e-3, rtol=1e-3), err

    print("KERNEL_OK")
</pallas_src>

<mosaic_0001>
module attributes {stable_mosaic.version = 11 : i64} {
  func.func @_attention_block_kernel(%arg0: i32, %arg1: memref<1x8x32xf32, #tpu.memory_space<vmem>>, %arg2: memref<1x8x32xf32, #tpu.memory_space<vmem>>, %arg3: memref<1x8x32xf32, #tpu.memory_space<vmem>>, %arg4: memref<32x128xf32, #tpu.memory_space<vmem>>, %arg5: memref<1x128xf32, #tpu.memory_space<vmem>>, %arg6: memref<32x128xf32, #tpu.memory_space<vmem>>, %arg7: memref<1x128xf32, #tpu.memory_space<vmem>>, %arg8: memref<32x128xf32, #tpu.memory_space<vmem>>, %arg9: memref<1x128xf32, #tpu.memory_space<vmem>>, %arg10: memref<1x8x16xf32, #tpu.memory_space<vmem>>) attributes {dimension_semantics = [#tpu.dimension_semantics<parallel>], iteration_bounds = array<i64: 2>, scalar_prefetch = 0 : i64, scratch_operands = 0 : i64, tpu.core_type = #tpu.core_type<tc>, window_params = [{transform_indices = @transform_0, window_bounds = array<i64: 1, 8, 32>}, {transform_indices = @transform_1, window_bounds = array<i64: 1, 8, 32>}, {transform_indices = @transform_2, window_bounds = array<i64: 1, 8, 32>}, {pipeline_mode = #tpu.pipeline_mode<synchronous>, transform_indices = @transform_3, window_bounds = array<i64: 32, 128>}, {pipeline_mode = #tpu.pipeline_mode<synchronous>, transform_indices = @transform_4, window_bounds = array<i64: 1, 128>}, {pipeline_mode = #tpu.pipeline_mode<synchronous>, transform_indices = @transform_5, window_bounds = array<i64: 32, 128>}, {pipeline_mode = #tpu.pipeline_mode<synchronous>, transform_indices = @transform_6, window_bounds = array<i64: 1, 128>}, {pipeline_mode = #tpu.pipeline_mode<synchronous>, transform_indices = @transform_7, window_bounds = array<i64: 32, 128>}, {pipeline_mode = #tpu.pipeline_mode<synchronous>, transform_indices = @transform_8, window_bounds = array<i64: 1, 128>}, {transform_indices = @transform_9, window_bounds = array<i64: 1, 8, 16>}]} {
    %c0 = arith.constant 0 : index
    %c0_0 = arith.constant 0 : index
    %c0_1 = arith.constant 0 : index
    %0 = vector.load %arg1[%c0, %c0_0, %c0_1] : memref<1x8x32xf32, #tpu.memory_space<vmem>>, vector<1x8x32xf32>
    %1 = vector.shape_cast %0 : vector<1x8x32xf32> to vector<8x32xf32>
    %c0_2 = arith.constant 0 : index
    %c0_3 = arith.constant 0 : index
    %2 = vector.load %arg4[%c0_2, %c0_3] : memref<32x128xf32, #tpu.memory_space<vmem>>, vector<32x128xf32>
    %cst = arith.constant dense<0.000000e+00> : vector<8x128xf32>
    %3 = tpu.matmul %1, %2, %cst {dimension_numbers = #tpu.dot_dimension_numbers<[1], [0], [0], [1], [0, 0, 1, 1], [], []>} : vector<8x32xf32>, vector<32x128xf32>, vector<8x128xf32> -> vector<8x128xf32>
    %c0_4 = arith.constant 0 : index
    %c0_5 = arith.constant 0 : index
    %4 = vector.load %arg5[%c0_4, %c0_5] : memref<1x128xf32, #tpu.memory_space<vmem>>, vector<1x128xf32>
    %5 = vector.broadcast %4 : vector<1x128xf32> to vector<8x128xf32>
    %6 = arith.addf %3, %5 : vector<8x128xf32>
    %7 = vector.shape_cast %6 : vector<8x128xf32> to vector<1x8x128xf32>
    %c0_6 = arith.constant 0 : index
    %c0_7 = arith.constant 0 : index
    %c0_8 = arith.constant 0 : index
    %8 = vector.load %arg2[%c0_6, %c0_7, %c0_8] : memref<1x8x32xf32, #tpu.memory_space<vmem>>, vector<1x8x32xf32>
    %9 = vector.shape_cast %8 : vector<1x8x32xf32> to vector<8x32xf32>
    %c0_9 = arith.constant 0 : index
    %c0_10 = arith.constant 0 : index
    %10 = vector.load %arg6[%c0_9, %c0_10] : memref<32x128xf32, #tpu.memory_space<vmem>>, vector<32x128xf32>
    %cst_11 = arith.constant dense<0.000000e+00> : vector<8x128xf32>
    %11 = tpu.matmul %9, %10, %cst_11 {dimension_numbers = #tpu.dot_dimension_numbers<[1], [0], [0], [1], [0, 0, 1, 1], [], []>} : vector<8x32xf32>, vector<32x128xf32>, vector<8x128xf32> -> vector<8x128xf32>
    %c0_12 = arith.constant 0 : index
    %c0_13 = arith.constant 0 : index
    %12 = vector.load %arg7[%c0_12, %c0_13] : memref<1x128xf32, #tpu.memory_space<vmem>>, vector<1x128xf32>
    %13 = vector.broadcast %12 : vector<1x128xf32> to vector<8x128xf32>
    %14 = arith.addf %11, %13 : vector<8x128xf32>
    %15 = vector.shape_cast %14 : vector<8x128xf32> to vector<1x8x128xf32>
    %c0_14 = arith.constant 0 : index
    %c0_15 = arith.constant 0 : index
    %c0_16 = arith.constant 0 : index
    %16 = vector.load %arg3[%c0_14, %c0_15, %c0_16] : memref<1x8x32xf32, #tpu.memory_space<vmem>>, vector<1x8x32xf32>
    %17 = vector.shape_cast %16 : vector<1x8x32xf32> to vector<8x32xf32>
    %c0_17 = arith.constant 0 : index
    %c0_18 = arith.constant 0 : index
    %18 = vector.load %arg8[%c0_17, %c0_18] : memref<32x128xf32, #tpu.memory_space<vmem>>, vector<32x128xf32>
    %cst_19 = arith.constant dense<0.000000e+00> : vector<8x128xf32>
    %19 = tpu.matmul %17, %18, %cst_19 {dimension_numbers = #tpu.dot_dimension_numbers<[1], [0], [0], [1], [0, 0, 1, 1], [], []>} : vector<8x32xf32>, vector<32x128xf32>, vector<8x128xf32> -> vector<8x128xf32>
    %c0_20 = arith.constant 0 : index
    %c0_21 = arith.constant 0 : index
    %20 = vector.load %arg9[%c0_20, %c0_21] : memref<1x128xf32, #tpu.memory_space<vmem>>, vector<1x128xf32>
    %21 = vector.broadcast %20 : vector<1x128xf32> to vector<8x128xf32>
    %22 = arith.addf %19, %21 : vector<8x128xf32>
    %23 = vector.shape_cast %22 : vector<8x128xf32> to vector<1x8x128xf32>
    %cst_22 = arith.constant dense<0.000000e+00> : vector<1x8x8xf32>
    %24 = tpu.matmul %7, %15, %cst_22 {dimension_numbers = #tpu.dot_dimension_numbers<[2], [2], [1], [1], [0, 0, 0, 1, 1, 1], [0], [0]>} : vector<1x8x128xf32>, vector<1x8x128xf32>, vector<1x8x8xf32> -> vector<1x8x8xf32>
    %cst_23 = arith.constant dense<0xFF800000> : vector<1x8xf32>
    %25 = vector.multi_reduction <maximumf>, %24, %cst_23 [1] : vector<1x8x8xf32> to vector<1x8xf32>
    %26 = vector.shape_cast %25 : vector<1x8xf32> to vector<1x1x8xf32>
    %27 = vector.broadcast %26 : vector<1x1x8xf32> to vector<1x8x8xf32>
    %28 = arith.subf %24, %27 : vector<1x8x8xf32>
    %29 = math.exp %28 : vector<1x8x8xf32>
    %cst_24 = arith.constant dense<0.000000e+00> : vector<1x8xf32>
    %30 = vector.multi_reduction <add>, %29, %cst_24 [1] : vector<1x8x8xf32> to vector<1x8xf32>
    %31 = vector.shape_cast %30 : vector<1x8xf32> to vector<1x1x8xf32>
    %cst_25 = arith.constant 1.000000e+00 : f32
    %32 = vector.broadcast %cst_25 : f32 to vector<1x1x8xf32>
    %33 = arith.divf %32, %31 : vector<1x1x8xf32>
    %34 = vector.broadcast %33 : vector<1x1x8xf32> to vector<1x8x8xf32>
    %35 = arith.mulf %29, %34 : vector<1x8x8xf32>
    %cst_26 = arith.constant dense<0.000000e+00> : vector<1x8x128xf32>
    %36 = tpu.matmul %35, %23, %cst_26 {dimension_numbers = #tpu.dot_dimension_numbers<[2], [1], [1], [2], [0, 0, 0, 1, 1, 2], [0], [0]>} : vector<1x8x8xf32>, vector<1x8x128xf32>, vector<1x8x128xf32> -> vector<1x8x128xf32>
    %37 = vector.extract_strided_slice %36 {offsets = [0, 0, 0], sizes = [1, 8, 16], strides = [1, 1, 1]} : vector<1x8x128xf32> to vector<1x8x16xf32>
    %c0_27 = arith.constant 0 : index
    %c0_28 = arith.constant 0 : index
    %c0_29 = arith.constant 0 : index
    %38 = vector.load %arg10[%c0_27, %c0_28, %c0_29] : memref<1x8x16xf32, #tpu.memory_space<vmem>>, vector<1x8x16xf32>
    tpu.vector_store %arg10[%c0_27, %c0_28, %c0_29], %37 {strides = array<i32>} : memref<1x8x16xf32, #tpu.memory_space<vmem>>, vector<1x8x16xf32>,
    return
  }
  func.func @transform_0(%arg0: i32) -> (i32, i32, i32) {
    %c0_i32 = arith.constant 0 : i32
    %c0_i32_0 = arith.constant 0 : i32
    %c0_i32_1 = arith.constant 0 : i32
    return %arg0, %c0_i32, %c0_i32_0 : i32, i32, i32
  }
  func.func @transform_1(%arg0: i32) -> (i32, i32, i32) {
    %c0_i32 = arith.constant 0 : i32
    %c0_i32_0 = arith.constant 0 : i32
    %c0_i32_1 = arith.constant 0 : i32
    return %arg0, %c0_i32, %c0_i32_0 : i32, i32, i32
  }
  func.func @transform_2(%arg0: i32) -> (i32, i32, i32) {
    %c0_i32 = arith.constant 0 : i32
    %c0_i32_0 = arith.constant 0 : i32
    %c0_i32_1 = arith.constant 0 : i32
    return %arg0, %c0_i32, %c0_i32_0 : i32, i32, i32
  }
  func.func @transform_3(%arg0: i32) -> (i32, i32) {
    %c0_i32 = arith.constant 0 : i32
    %c0_i32_0 = arith.constant 0 : i32
    %c0_i32_1 = arith.constant 0 : i32
    return %c0_i32, %c0_i32_0 : i32, i32
  }
  func.func @transform_4(%arg0: i32) -> (i32, i32) {
    %c0_i32 = arith.constant 0 : i32
    %c0_i32_0 = arith.constant 0 : i32
    %c0_i32_1 = arith.constant 0 : i32
    return %c0_i32, %c0_i32_0 : i32, i32
  }
  func.func @transform_5(%arg0: i32) -> (i32, i32) {
    %c0_i32 = arith.constant 0 : i32
    %c0_i32_0 = arith.constant 0 : i32
    %c0_i32_1 = arith.constant 0 : i32
    return %c0_i32, %c0_i32_0 : i32, i32
  }
  func.func @transform_6(%arg0: i32) -> (i32, i32) {
    %c0_i32 = arith.constant 0 : i32
    %c0_i32_0 = arith.constant 0 : i32
    %c0_i32_1 = arith.constant 0 : i32
    return %c0_i32, %c0_i32_0 : i32, i32
  }
  func.func @transform_7(%arg0: i32) -> (i32, i32) {
    %c0_i32 = arith.constant 0 : i32
    %c0_i32_0 = arith.constant 0 : i32
    %c0_i32_1 = arith.constant 0 : i32
    return %c0_i32, %c0_i32_0 : i32, i32
  }
  func.func @transform_8(%arg0: i32) -> (i32, i32) {
    %c0_i32 = arith.constant 0 : i32
    %c0_i32_0 = arith.constant 0 : i32
    %c0_i32_1 = arith.constant 0 : i32
    return %c0_i32, %c0_i32_0 : i32, i32
  }
  func.func @transform_9(%arg0: i32) -> (i32, i32, i32) {
    %c0_i32 = arith.constant 0 : i32
    %c0_i32_0 = arith.constant 0 : i32
    %c0_i32_1 = arith.constant 0 : i32
    return %arg0, %c0_i32, %c0_i32_0 : i32, i32, i32
  }
}

</mosaic_0001>

<llo_original>
// kernel: tpu_custom_call.1
$region0: #{tpu_custom_call.1}
  #allocation0 [shape = 'u32[]', space=smem, size = 0x4, offset = 0x4, fixed_abs, tag = 'smem constant byte address 0x4 - core index']
  #allocation1 [shape = 'u32[72,128]{1,0:T(1,128)}', space=vmem, size = 0x9000, scoped, tag = 'internal scratch']
  %s0 = inlined_call_operand.hbm [shape: f32[2,8,32], index: 0, kind: input, shape index: {}]
  %s1 = inlined_call_operand.hbm [shape: f32[2,8,32], index: 1, kind: input, shape index: {}]
  %s2 = inlined_call_operand.hbm [shape: f32[2,8,32], index: 2, kind: input, shape index: {}]
  %s3 = inlined_call_operand.hbm [shape: f32[32,128], index: 3, kind: input, shape index: {}]
  %s4 = inlined_call_operand.vmem [shape: f32[1,128], index: 4, kind: input, shape index: {}]
  %s5 = inlined_call_operand.hbm [shape: f32[32,128], index: 5, kind: input, shape index: {}]
  %s6 = inlined_call_operand.vmem [shape: f32[1,128], index: 6, kind: input, shape index: {}]
  %s7 = inlined_call_operand.hbm [shape: f32[32,128], index: 7, kind: input, shape index: {}]
  %s8 = inlined_call_operand.vmem [shape: f32[1,128], index: 8, kind: input, shape index: {}]
  %s9 = inlined_call_operand.hbm [shape: f32[2,8,16], index: 9, kind: output, shape index: {}]
  %s10 = sld [smem:[#allocation0]]
  $region93: #{tpu_custom_call.1} parent=0
    _
  %s12 = ssub.s32 1, %s10
  %s13 = scalar_select 0, %s12, %s10
  $region1: #{tpu_custom_call.1} parent=0
    #allocation2 [shape = 'u8[8192]{0}', space=vmem, size = 0x2000, scoped, tag = 'input window, operand 0']
    #allocation3 [shape = 's32[2]{0}', space=sflag, size = 0x8, scoped, tag = 'scoped memory for tpu_custom_call.1']
    #allocation4 [shape = 's32[2]{0}', space=sflag, size = 0x8, scoped, tag = 'scoped memory for tpu_custom_call.1']
    #allocation5 [shape = 'u8[8192]{0}', space=vmem, size = 0x2000, scoped, tag = 'input window, operand 1']
    #allocation6 [shape = 's32[2]{0}', space=sflag, size = 0x8, scoped, tag = 'scoped memory for tpu_custom_call.1']
    #allocation7 [shape = 'u8[8192]{0}', space=vmem, size = 0x2000, scoped, tag = 'input window, operand 2']
    #allocation8 [shape = 'u8[16384]{0}', space=vmem, size = 0x4000, scoped, tag = 'input window, operand 3, single buffered']
    #allocation9 [shape = 's32[1]{0}', space=sflag, size = 0x4, scoped, tag = 'scoped memory for tpu_custom_call.1']
    #allocation10 [shape = 'u8[16384]{0}', space=vmem, size = 0x4000, scoped, tag = 'input window, operand 5, single buffered']
    #allocation11 [shape = 'u8[16384]{0}', space=vmem, size = 0x4000, scoped, tag = 'input window, operand 7, single buffered']
    #allocation12 [shape = 's32[1]{0}', space=sflag, size = 0x4, scoped, tag = 'scoped memory for tpu_custom_call.1']
    #allocation13 [shape = 'u8[8192]{0}', space=vmem, size = 0x2000, scoped, tag = 'output window, operand 0']
    %14 = vsyncpa [#allocation3], 0
    %s15 = scalar_lea.sflag [#allocation3], 1
    %16 = vsyncpa %s15, 0
    %17 = vsyncpa [#allocation6], 0
    %s18 = scalar_lea.sflag [#allocation6], 1
    %19 = vsyncpa %s18, 0
    %20 = vsyncpa [#allocation9], 0
    %21 = vsyncpa [#allocation12], 0
    %22 = vsyncpa [#allocation4], 0
    %s23 = scalar_lea.sflag [#allocation4], 1
    %24 = vsyncpa %s23, 0
    loop: start=0, step=1, limit=4
    $region2: #{tpu_custom_call.1} parent=1 // loop_pre_header
      _
    $region3: #{tpu_custom_call.1} parent=1 // loop_header
      %s26 = sphi 0, %s30
      %p27 = scmp.ge.s32.totalorder %s26, 4
      %s36 = sphi 0, %s38
      %s39 = sphi 0, %s36
      %s40 = sphi 0, %s39
      %s56 = sphi 0, %s40
      %s62 = sphi 0, %s64
      %s65 = sphi 0, %s62
      %s66 = sphi 0, %s65
      %s82 = sphi 0, %s66
      %s88 = sphi 0, %s90
      %s91 = sphi 0, %s88
      %s92 = sphi 0, %s91
      %s108 = sphi 0, %s92
      %s112 = sphi 0, %s112
      %s114 = sphi 0, %s112
      %s115 = sphi 0, %s114
      %s129 = sphi 0, %s115
      %s133 = sphi 0, %s133
      %s135 = sphi 0, %s133
      %s136 = sphi 0, %s135
      %s150 = sphi 0, %s136
      %s154 = sphi 0, %s154
      %s156 = sphi 0, %s154
      %s157 = sphi 0, %s156
      %s171 = sphi 0, %s157
      %s175 = sphi 0, %s175
      %s177 = sphi 0, %s175
      %s178 = sphi 0, %s177
      %s192 = sphi 0, %s178
      %s196 = sphi 0, %s196
      %s198 = sphi 0, %s196
      %s199 = sphi 0, %s198
      %s213 = sphi 0, %s199
      %s217 = sphi 0, %s217
      %s219 = sphi 0, %s217
      %s220 = sphi 0, %s219
      %s234 = sphi 0, %s220
      %s240 = sphi 0, %s242
      %s243 = sphi 0, %s240
      %s244 = sphi 0, %s243
      %s260 = sphi 0, %s244
    $region4: #{tpu_custom_call.1} parent=1 // loop_header_branch
      %29 = sbr.rel (%p27) target = $region8
    $region5: #{tpu_custom_call.1} parent=1 // loop_body
      %s31 = ssub.s32 %s26, 1
      %s32 = ssub.s32 %s26, 2
      %s33 = sadd.s32 %s26, 1
      %s34 = ssub.s32 %s26, %s33
      %p35 = scmp.eq.s32.totalorder %s34, 0
      %s37 = sadd.s32 %s36, 1
      %s38 = scalar_select %p35, %s36, %s37
      %p41 = pneg %p35
      %p42 = scmp.eq.s32.totalorder %s26, 1
      %p43 = por %p41, %p42
      %p44 = scmp.ne.s32.totalorder %s36, %s39
      %p45 = scmp.eq.s32.totalorder %s26, 0
      %p46 = por %p44, %p45
      %p47 = scmp.ne.s32.totalorder %s36, %s39
      %p48 = scmp.eq.s32.totalorder %s31, 1
      %p49 = por %p47, %p48
      %p50 = scmp.ne.s32.totalorder %s39, %s40
      %p51 = scmp.eq.s32.totalorder %s31, 0
      %p52 = por %p50, %p51
      %p53 = scmp.ne.s32.totalorder %s39, %s40
      %p54 = scmp.eq.s32.totalorder %s32, 1
      %p55 = por %p53, %p54
      %p57 = scmp.ne.s32.totalorder %s40, %s56
      %p58 = scmp.eq.s32.totalorder %s32, 0
      %p59 = por %p57, %p58
      %s60 = ssub.s32 %s26, %s33
      %p61 = scmp.eq.s32.totalorder %s60, 0
      %s63 = sadd.s32 %s62, 1
      %s64 = scalar_select %p61, %s62, %s63
      %p67 = pneg %p61
      %p68 = scmp.eq.s32.totalorder %s26, 1
      %p69 = por %p67, %p68
      %p70 = scmp.ne.s32.totalorder %s62, %s65
      %p71 = scmp.eq.s32.totalorder %s26, 0
      %p72 = por %p70, %p71
      %p73 = scmp.ne.s32.totalorder %s62, %s65
      %p74 = scmp.eq.s32.totalorder %s31, 1
      %p75 = por %p73, %p74
      %p76 = scmp.ne.s32.totalorder %s65, %s66
      %p77 = scmp.eq.s32.totalorder %s31, 0
      %p78 = por %p76, %p77
      %p79 = scmp.ne.s32.totalorder %s65, %s66
      %p80 = scmp.eq.s32.totalorder %s32, 1
      %p81 = por %p79, %p80
      %p83 = scmp.ne.s32.totalorder %s66, %s82
      %p84 = scmp.eq.s32.totalorder %s32, 0
      %p85 = por %p83, %p84
      %s86 = ssub.s32 %s26, %s33
      %p87 = scmp.eq.s32.totalorder %s86, 0
      %s89 = sadd.s32 %s88, 1
      %s90 = scalar_select %p87, %s88, %s89
      %p93 = pneg %p87
      %p94 = scmp.eq.s32.totalorder %s26, 1
      %p95 = por %p93, %p94
      %p96 = scmp.ne.s32.totalorder %s88, %s91
      %p97 = scmp.eq.s32.totalorder %s26, 0
      %p98 = por %p96, %p97
      %p99 = scmp.ne.s32.totalorder %s88, %s91
      %p100 = scmp.eq.s32.totalorder %s31, 1
      %p101 = por %p99, %p100
      %p102 = scmp.ne.s32.totalorder %s91, %s92
      %p103 = scmp.eq.s32.totalorder %s31, 0
      %p104 = por %p102, %p103
      %p105 = scmp.ne.s32.totalorder %s91, %s92
      %p106 = scmp.eq.s32.totalorder %s32, 1
      %p107 = por %p105, %p106
      %p109 = scmp.ne.s32.totalorder %s92, %s108
      %p110 = scmp.eq.s32.totalorder %s32, 0
      %p111 = por %p109, %p110
      %s113 = sadd.s32 %s112, 1
      %p116 = scmp.eq.s32.totalorder %s26, 1
      %p117 = scmp.ne.s32.totalorder %s112, %s114
      %p118 = scmp.eq.s32.totalorder %s26, 0
      %p119 = por %p117, %p118
      %p120 = scmp.ne.s32.totalorder %s112, %s114
      %p121 = scmp.eq.s32.totalorder %s31, 1
      %p122 = por %p120, %p121
      %p123 = scmp.ne.s32.totalorder %s114, %s115
      %p124 = scmp.eq.s32.totalorder %s31, 0
      %p125 = por %p123, %p124
      %p126 = scmp.ne.s32.totalorder %s114, %s115
      %p127 = scmp.eq.s32.totalorder %s32, 1
      %p128 = por %p126, %p127
      %p130 = scmp.ne.s32.totalorder %s115, %s129
      %p131 = scmp.eq.s32.totalorder %s32, 0
      %p132 = por %p130, %p131
      %s134 = sadd.s32 %s133, 1
      %p137 = scmp.eq.s32.totalorder %s26, 1
      %p138 = scmp.ne.s32.totalorder %s133, %s135
      %p139 = scmp.eq.s32.totalorder %s26, 0
      %p140 = por %p138, %p139
      %p141 = scmp.ne.s32.totalorder %s133, %s135
      %p142 = scmp.eq.s32.totalorder %s31, 1
      %p143 = por %p141, %p142
      %p144 = scmp.ne.s32.totalorder %s135, %s136
      %p145 = scmp.eq.s32.totalorder %s31, 0
      %p146 = por %p144, %p145
      %p147 = scmp.ne.s32.totalorder %s135, %s136
      %p148 = scmp.eq.s32.totalorder %s32, 1
      %p149 = por %p147, %p148
      %p151 = scmp.ne.s32.totalorder %s136, %s150
      %p152 = scmp.eq.s32.totalorder %s32, 0
      %p153 = por %p151, %p152
      %s155 = sadd.s32 %s154, 1
      %p158 = scmp.eq.s32.totalorder %s26, 1
      %p159 = scmp.ne.s32.totalorder %s154, %s156
      %p160 = scmp.eq.s32.totalorder %s26, 0
      %p161 = por %p159, %p160
      %p162 = scmp.ne.s32.totalorder %s154, %s156
      %p163 = scmp.eq.s32.totalorder %s31, 1
      %p164 = por %p162, %p163
      %p165 = scmp.ne.s32.totalorder %s156, %s157
      %p166 = scmp.eq.s32.totalorder %s31, 0
      %p167 = por %p165, %p166
      %p168 = scmp.ne.s32.totalorder %s156, %s157
      %p169 = scmp.eq.s32.totalorder %s32, 1
      %p170 = por %p168, %p169
      %p172 = scmp.ne.s32.totalorder %s157, %s171
      %p173 = scmp.eq.s32.totalorder %s32, 0
      %p174 = por %p172, %p173
      %s176 = sadd.s32 %s175, 1
      %p179 = scmp.eq.s32.totalorder %s26, 1
      %p180 = scmp.ne.s32.totalorder %s175, %s177
      %p181 = scmp.eq.s32.totalorder %s26, 0
      %p182 = por %p180, %p181
      %p183 = scmp.ne.s32.totalorder %s175, %s177
      %p184 = scmp.eq.s32.totalorder %s31, 1
      %p185 = por %p183, %p184
      %p186 = scmp.ne.s32.totalorder %s177, %s178
      %p187 = scmp.eq.s32.totalorder %s31, 0
      %p188 = por %p186, %p187
      %p189 = scmp.ne.s32.totalorder %s177, %s178
      %p190 = scmp.eq.s32.totalorder %s32, 1
      %p191 = por %p189, %p190
      %p193 = scmp.ne.s32.totalorder %s178, %s192
      %p194 = scmp.eq.s32.totalorder %s32, 0
      %p195 = por %p193, %p194
      %s197 = sadd.s32 %s196, 1
      %p200 = scmp.eq.s32.totalorder %s26, 1
      %p201 = scmp.ne.s32.totalorder %s196, %s198
      %p202 = scmp.eq.s32.totalorder %s26, 0
      %p203 = por %p201, %p202
      %p204 = scmp.ne.s32.totalorder %s196, %s198
      %p205 = scmp.eq.s32.totalorder %s31, 1
      %p206 = por %p204, %p205
      %p207 = scmp.ne.s32.totalorder %s198, %s199
      %p208 = scmp.eq.s32.totalorder %s31, 0
      %p209 = por %p207, %p208
      %p210 = scmp.ne.s32.totalorder %s198, %s199
      %p211 = scmp.eq.s32.totalorder %s32, 1
      %p212 = por %p210, %p211
      %p214 = scmp.ne.s32.totalorder %s199, %s213
      %p215 = scmp.eq.s32.totalorder %s32, 0
      %p216 = por %p214, %p215
      %s218 = sadd.s32 %s217, 1
      %p221 = scmp.eq.s32.totalorder %s26, 1
      %p222 = scmp.ne.s32.totalorder %s217, %s219
      %p223 = scmp.eq.s32.totalorder %s26, 0
      %p224 = por %p222, %p223
      %p225 = scmp.ne.s32.totalorder %s217, %s219
      %p226 = scmp.eq.s32.totalorder %s31, 1
      %p227 = por %p225, %p226
      %p228 = scmp.ne.s32.totalorder %s219, %s220
      %p229 = scmp.eq.s32.totalorder %s31, 0
      %p230 = por %p228, %p229
      %p231 = scmp.ne.s32.totalorder %s219, %s220
      %p232 = scmp.eq.s32.totalorder %s32, 1
      %p233 = por %p231, %p232
      %p235 = scmp.ne.s32.totalorder %s220, %s234
      %p236 = scmp.eq.s32.totalorder %s32, 0
      %p237 = por %p235, %p236
      %s238 = ssub.s32 %s26, %s33
      %p239 = scmp.eq.s32.totalorder %s238, 0
      %s241 = sadd.s32 %s240, 1
      %s242 = scalar_select %p239, %s240, %s241
      %p245 = pneg %p239
      %p246 = scmp.eq.s32.totalorder %s26, 1
      %p247 = por %p245, %p246
      %p248 = scmp.ne.s32.totalorder %s240, %s243
      %p249 = scmp.eq.s32.totalorder %s26, 0
      %p250 = por %p248, %p249
      %p251 = scmp.ne.s32.totalorder %s240, %s243
      %p252 = scmp.eq.s32.totalorder %s31, 1
      %p253 = por %p251, %p252
      %p254 = scmp.ne.s32.totalorder %s243, %s244
      %p255 = scmp.eq.s32.totalorder %s31, 0
      %p256 = por %p254, %p255
      %p257 = scmp.ne.s32.totalorder %s243, %s244
      %p258 = scmp.eq.s32.totalorder %s32, 1
      %p259 = por %p257, %p258
      %p261 = scmp.ne.s32.totalorder %s244, %s260
      %p262 = scmp.eq.s32.totalorder %s32, 0
      %p263 = por %p261, %p262
      %p264 = scmp.le.s32.totalorder 1, %s26
      %p265 = scmp.lt.s32.totalorder %s26, 3
      %p266 = pnand %p264, %p265
      %p267 = pneg %p266
      // Predicated region
      $region9: #{tpu_custom_call.1} parent=5 // pred_check
        _
      $region10: #{tpu_custom_call.1} parent=5 // pred_check_branch
        %269 = sbr.rel (%p266) target = $region12
      $region11: #{tpu_custom_call.1} parent=5 // pred_region
        %s270 = ssub.s32 %s26, 1
        // Predicated region
        $region13: #{tpu_custom_call.1} parent=11 // pred_check
          %p271 = pneg %p125
        $region14: #{tpu_custom_call.1} parent=11 // pred_check_branch
          %273 = sbr.rel (%p271) target = $region16
        $region15: #{tpu_custom_call.1} parent=11 // pred_region
          %275 = vsyncadd [#allocation9], 0
          %s276 = sshll.u32 %s3, 4
          %s277 = int_to_ptr.hbm [resolvable:$true] %s276
          %s278 = sshll.u32 [#allocation8], 4
          %s279 = int_to_ptr.vmem [resolvable:$true] %s278
          %284 = dma.hbm_to_vmem [thread:$0]  %s277, 512, %s279, [#allocation9], 128, 128, 8
        $region16: #{tpu_custom_call.1} parent=11 // pred_fallthru
          _
        // Predicated region
        $region17: #{tpu_custom_call.1} parent=11 // pred_check
          %p285 = pneg %p146
        $region18: #{tpu_custom_call.1} parent=11 // pred_check_branch
          %287 = sbr.rel (%p285) target = $region20
        $region19: #{tpu_custom_call.1} parent=11 // pred_region
          _
        $region20: #{tpu_custom_call.1} parent=11 // pred_fallthru
          _
        // Predicated region
        $region21: #{tpu_custom_call.1} parent=11 // pred_check
          %p288 = pneg %p167
        $region22: #{tpu_custom_call.1} parent=11 // pred_check_branch
          %290 = sbr.rel (%p288) target = $region24
        $region23: #{tpu_custom_call.1} parent=11 // pred_region
          %292 = vsyncadd [#allocation9], 0
          %s293 = sshll.u32 %s5, 4
          %s294 = int_to_ptr.hbm [resolvable:$true] %s293
          %s295 = sshll.u32 [#allocation10], 4
          %s296 = int_to_ptr.vmem [resolvable:$true] %s295
          %301 = dma.hbm_to_vmem [thread:$0]  %s294, 512, %s296, [#allocation9], 128, 128, 8
        $region24: #{tpu_custom_call.1} parent=11 // pred_fallthru
          _
        // Predicated region
        $region25: #{tpu_custom_call.1} parent=11 // pred_check
          %p302 = pneg %p188
        $region26: #{tpu_custom_call.1} parent=11 // pred_check_branch
          %304 = sbr.rel (%p302) target = $region28
        $region27: #{tpu_custom_call.1} parent=11 // pred_region
          _
        $region28: #{tpu_custom_call.1} parent=11 // pred_fallthru
          _
        // Predicated region
        $region29: #{tpu_custom_call.1} parent=11 // pred_check
          %p305 = pneg %p209
        $region30: #{tpu_custom_call.1} parent=11 // pred_check_branch
          %307 = sbr.rel (%p305) target = $region32
        $region31: #{tpu_custom_call.1} parent=11 // pred_region
          %309 = vsyncadd [#allocation12], 0
          %s310 = sshll.u32 %s7, 4
          %s311 = int_to_ptr.hbm [resolvable:$true] %s310
          %s312 = sshll.u32 [#allocation11], 4
          %s313 = int_to_ptr.vmem [resolvable:$true] %s312
          %318 = dma.hbm_to_vmem [thread:$0]  %s311, 512, %s313, [#allocation12], 128, 128, 8
        $region32: #{tpu_custom_call.1} parent=11 // pred_fallthru
          _
        // Predicated region
        $region33: #{tpu_custom_call.1} parent=11 // pred_check
          %p319 = pneg %p230
        $region34: #{tpu_custom_call.1} parent=11 // pred_check_branch
          %321 = sbr.rel (%p319) target = $region36
        $region35: #{tpu_custom_call.1} parent=11 // pred_region
          _
        $region36: #{tpu_custom_call.1} parent=11 // pred_fallthru
          _
      $region12: #{tpu_custom_call.1} parent=5 // pred_fallthru
        _
      %p322 = scmp.lt.s32.totalorder %s26, 2
      // Predicated region
      $region37: #{tpu_custom_call.1} parent=5 // pred_check
        %p323 = pneg %p322
      $region38: #{tpu_custom_call.1} parent=5 // pred_check_branch
        %325 = sbr.rel (%p323) target = $region40
      $region39: #{tpu_custom_call.1} parent=5 // pred_region
        // Predicated region
        $region41: #{tpu_custom_call.1} parent=39 // pred_check
          %p326 = pneg %p46
        $region42: #{tpu_custom_call.1} parent=39 // pred_check_branch
          %328 = sbr.rel (%p326) target = $region44
        $region43: #{tpu_custom_call.1} parent=39 // pred_region
          %s329 = sand.u32 %s36, 1
          %s330 = scalar_lea.sflag [#allocation3], %s329
          %s331 = sand.u32 %s36, 1
          %s332 = smul.addr %s331, 8
          %s333 = scalar_lea.vmem [#allocation2], %s332
          %335 = vsyncadd %s330, 0
          %s336 = smul.addr %s26, 8
          %s337 = scalar_lea.hbm %s0, %s336
          %s339 = sshll.u32 %s337, 4
          %s340 = int_to_ptr.hbm [resolvable:$true] %s339
          %s341 = sshll.u32 %s333, 4
          %s342 = int_to_ptr.vmem [resolvable:$true] %s341
          %344 = dma.hbm_to_vmem [thread:$0]  %s340, 128, %s342, %s330
        $region44: #{tpu_custom_call.1} parent=39 // pred_fallthru
          _
        // Predicated region
        $region45: #{tpu_custom_call.1} parent=39 // pred_check
          %p345 = pneg %p72
        $region46: #{tpu_custom_call.1} parent=39 // pred_check_branch
          %347 = sbr.rel (%p345) target = $region48
        $region47: #{tpu_custom_call.1} parent=39 // pred_region
          %s348 = sand.u32 %s26, 1
          %s349 = scalar_lea.sflag [#allocation6], %s348
          %s350 = sand.u32 %s62, 1
          %s351 = smul.addr %s350, 8
          %s352 = scalar_lea.vmem [#allocation5], %s351
          %354 = vsyncadd %s349, 0
          %s355 = smul.addr %s26, 8
          %s356 = scalar_lea.hbm %s1, %s355
          %s358 = sshll.u32 %s356, 4
          %s359 = int_to_ptr.hbm [resolvable:$true] %s358
          %s360 = sshll.u32 %s352, 4
          %s361 = int_to_ptr.vmem [resolvable:$true] %s360
          %363 = dma.hbm_to_vmem [thread:$0]  %s359, 128, %s361, %s349
        $region48: #{tpu_custom_call.1} parent=39 // pred_fallthru
          _
        // Predicated region
        $region49: #{tpu_custom_call.1} parent=39 // pred_check
          %p364 = pneg %p98
        $region50: #{tpu_custom_call.1} parent=39 // pred_check_branch
          %366 = sbr.rel (%p364) target = $region52
        $region51: #{tpu_custom_call.1} parent=39 // pred_region
          %s367 = sand.u32 %s26, 1
          %s368 = scalar_lea.sflag [#allocation6], %s367
          %s369 = sand.u32 %s88, 1
          %s370 = smul.addr %s369, 8
          %s371 = scalar_lea.vmem [#allocation7], %s370
          %373 = vsyncadd %s368, 0
          %s374 = smul.addr %s26, 8
          %s375 = scalar_lea.hbm %s2, %s374
          %s377 = sshll.u32 %s375, 4
          %s378 = int_to_ptr.hbm [resolvable:$true] %s377
          %s379 = sshll.u32 %s371, 4
          %s380 = int_to_ptr.vmem [resolvable:$true] %s379
          %382 = dma.hbm_to_vmem [thread:$0]  %s378, 128, %s380, %s368
        $region52: #{tpu_custom_call.1} parent=39 // pred_fallthru
          _
      $region40: #{tpu_custom_call.1} parent=5 // pred_fallthru
        _
      %p383 = scmp.le.s32.totalorder 1, %s26
      %p384 = scmp.lt.s32.totalorder %s26, 3
      %p385 = pnand %p383, %p384
      %p386 = pneg %p385
      // Predicated region
      $region53: #{tpu_custom_call.1} parent=5 // pred_check
        _
      $region54: #{tpu_custom_call.1} parent=5 // pred_check_branch
        %388 = sbr.rel (%p385) target = $region56
      $region55: #{tpu_custom_call.1} parent=5 // pred_region
        %s389 = ssub.s32 %s26, 1
        %s390 = sand.u32 %s39, 1
        %s391 = scalar_lea.sflag [#allocation3], %s390
        %s392 = sand.u32 %s39, 1
        %s393 = smul.addr %s392, 8
        %s394 = scalar_lea.vmem [#allocation2], %s393
        // Predicated region
        $region57: #{tpu_custom_call.1} parent=55 // pred_check
          %p395 = pneg %p52
        $region58: #{tpu_custom_call.1} parent=55 // pred_check_branch
          %397 = sbr.rel (%p395) target = $region60
        $region59: #{tpu_custom_call.1} parent=55 // pred_region
          %399 = dma.done %s391, 128
        $region60: #{tpu_custom_call.1} parent=55 // pred_fallthru
          _
        %s400 = sand.u32 %s31, 1
        %s401 = scalar_lea.sflag [#allocation6], %s400
        %s402 = sand.u32 %s65, 1
        %s403 = smul.addr %s402, 8
        %s404 = scalar_lea.vmem [#allocation5], %s403
        // Predicated region
        $region61: #{tpu_custom_call.1} parent=55 // pred_check
          %p405 = pneg %p78
        $region62: #{tpu_custom_call.1} parent=55 // pred_check_branch
          %407 = sbr.rel (%p405) target = $region64
        $region63: #{tpu_custom_call.1} parent=55 // pred_region
          %409 = dma.done %s401, 128
        $region64: #{tpu_custom_call.1} parent=55 // pred_fallthru
          _
        %s410 = sand.u32 %s31, 1
        %s411 = scalar_lea.sflag [#allocation6], %s410
        %s412 = sand.u32 %s91, 1
        %s413 = smul.addr %s412, 8
        %s414 = scalar_lea.vmem [#allocation7], %s413
        // Predicated region
        $region65: #{tpu_custom_call.1} parent=55 // pred_check
          %p415 = pneg %p104
        $region66: #{tpu_custom_call.1} parent=55 // pred_check_branch
          %417 = sbr.rel (%p415) target = $region68
        $region67: #{tpu_custom_call.1} parent=55 // pred_region
          %419 = dma.done %s411, 128
        $region68: #{tpu_custom_call.1} parent=55 // pred_fallthru
          _
        // Predicated region
        $region69: #{tpu_custom_call.1} parent=55 // pred_check
          %p420 = pneg %p125
        $region70: #{tpu_custom_call.1} parent=55 // pred_check_branch
          %422 = sbr.rel (%p420) target = $region72
        $region71: #{tpu_custom_call.1} parent=55 // pred_region
          %424 = dma.done [#allocation9], 512
        $region72: #{tpu_custom_call.1} parent=55 // pred_fallthru
          _
        // Predicated region
        $region73: #{tpu_custom_call.1} parent=55 // pred_check
          %p425 = pneg %p167
        $region74: #{tpu_custom_call.1} parent=55 // pred_check_branch
          %427 = sbr.rel (%p425) target = $region76
        $region75: #{tpu_custom_call.1} parent=55 // pred_region
          %429 = dma.done [#allocation9], 512
        $region76: #{tpu_custom_call.1} parent=55 // pred_fallthru
          _
        // Predicated region
        $region77: #{tpu_custom_call.1} parent=55 // pred_check
          %p430 = pneg %p209
        $region78: #{tpu_custom_call.1} parent=55 // pred_check_branch
          %432 = sbr.rel (%p430) target = $region80
        $region79: #{tpu_custom_call.1} parent=55 // pred_region
          %434 = dma.done [#allocation12], 512
        $region80: #{tpu_custom_call.1} parent=55 // pred_fallthru
          _
        %s435 = sand.u32 %s39, 1
        %s436 = scalar_lea.sflag [#allocation3], %s435
        %s437 = sand.u32 %s39, 1
        %s438 = smul.addr %s437, 8
        %s439 = scalar_lea.vmem [#allocation2], %s438
        %p440 = pneg %p52
        %p441 = pneg %p49
        %s442 = sand.u32 %s31, 1
        %s443 = scalar_lea.sflag [#allocation6], %s442
        %s444 = sand.u32 %s65, 1
        %s445 = smul.addr %s444, 8
        %s446 = scalar_lea.vmem [#allocation5], %s445
        %p447 = pneg %p78
        %p448 = pneg %p75
        %s449 = sand.u32 %s31, 1
        %s450 = scalar_lea.sflag [#allocation6], %s449
        %s451 = sand.u32 %s91, 1
        %s452 = smul.addr %s451, 8
        %s453 = scalar_lea.vmem [#allocation7], %s452
        %p454 = pneg %p104
        %p455 = pneg %p101
        %p456 = pneg %p125
        %p457 = pneg %p122
        %p458 = pneg %p146
        %p459 = pneg %p143
        %p460 = pneg %p167
        %p461 = pneg %p164
        %p462 = pneg %p188
        %p463 = pneg %p185
        %p464 = pneg %p209
        %p465 = pneg %p206
        %p466 = pneg %p230
        %p467 = pneg %p227
        %p468 = pneg %p256
        %p469 = pneg %p253
        %s470 = sand.u32 %s243, 1
        %s471 = scalar_lea.sflag [#allocation4], %s470
        %s472 = sand.u32 %s243, 1
        %s473 = smul.addr %s472, 8
        %s474 = scalar_lea.vmem [#allocation13], %s473
        %v475 = vld [vmem:[%s394] sm:$0xff]
        %v476 = vld [vmem:[#allocation8] sm:$0xff]
        %v477 = vld [vmem:[#allocation8 + $0x8] sm:$0xff]
        %v478 = vld [vmem:[#allocation8 + $0x10] sm:$0xff]
        %v479 = vld [vmem:[#allocation8 + $0x18] sm:$0xff]
        %v480 = vld [vmem:[%s4] sm:$0x1]
        %v482 = vperm.slane %v480, 0
        %vm484 = vcmask 261120
        %v486 = vsel %vm484, %v475, 0
        %488 = vmatpush.msra.mxu0 0.0
        %489 = vmatpush.msra.mxu0 0.0
        %490 = vmatpush.msra.mxu0 0.0
        %491 = vmatpush.msra.mxu0 0.0
        %492 = vmatpush.msra.mxu0 0.0
        %493 = vmatpush.msra.mxu0 0.0
        %494 = vmatpush.msra.mxu0 0.0
        %495 = vmatpush.msra.mxu0 0.0
        %496 = vmatpush.msra.mxu0 0.0
        %497 = vmatpush.msra.mxu0 0.0
        %498 = vmatpush.msra.mxu0 0.0
        %499 = vmatpush.msra.mxu0 0.0
        %500 = vmatpush.msra.mxu0 %v479
        %501 = vmatpush.msra.mxu0 %v478
        %502 = vmatpush.msra.mxu0 %v477
        %503 = vmatpush.msra.mxu0 %v476
        %504 = vmatmul.f32.gmra.mxu0 %v486
        %v505 = vpop.f32.mrf.mxu0
        %v506 = vadd.f32 %v482, %v505
        %507 = vdwg.mxu0
        %v508 = vld [vmem:[%s404] sm:$0xff]
        %v509 = vld [vmem:[#allocation10] sm:$0xff]
        %v510 = vld [vmem:[#allocation10 + $0x8] sm:$0xff]
        %v511 = vld [vmem:[#allocation10 + $0x10] sm:$0xff]
        %v512 = vld [vmem:[#allocation10 + $0x18] sm:$0xff]
        %v513 = vld [vmem:[%s6] sm:$0x1]
        %v515 = vperm.slane %v513, 0
        %v518 = vsel %vm484, %v508, 0
        %520 = vmatpush.msra.mxu0 0.0
        %521 = vmatpush.msra.mxu0 0.0
        %522 = vmatpush.msra.mxu0 0.0
        %523 = vmatpush.msra.mxu0 0.0
        %524 = vmatpush.msra.mxu0 0.0
        %525 = vmatpush.msra.mxu0 0.0
        %526 = vmatpush.msra.mxu0 0.0
        %527 = vmatpush.msra.mxu0 0.0
        %528 = vmatpush.msra.mxu0 0.0
        %529 = vmatpush.msra.mxu0 0.0
        %530 = vmatpush.msra.mxu0 0.0
        %531 = vmatpush.msra.mxu0 0.0
        %532 = vmatpush.msra.mxu0 %v512
        %533 = vmatpush.msra.mxu0 %v511
        %534 = vmatpush.msra.mxu0 %v510
        %535 = vmatpush.msra.mxu0 %v509
        %536 = vmatmul.f32.gmra.mxu0 %v518
        %v537 = vpop.f32.mrf.mxu0
        %v538 = vadd.f32 %v515, %v537
        %539 = vdwg.mxu0
        %v540 = vld [vmem:[%s414] sm:$0xff]
        %v541 = vld [vmem:[#allocation11] sm:$0xff]
        %v542 = vld [vmem:[#allocation11 + $0x8] sm:$0xff]
        %v543 = vld [vmem:[#allocation11 + $0x10] sm:$0xff]
        %v544 = vld [vmem:[#allocation11 + $0x18] sm:$0xff]
        %v545 = vld [vmem:[%s8] sm:$0x1]
        %v547 = vperm.slane %v545, 0
        %v550 = vsel %vm484, %v540, 0
        %552 = vmatpush.msra.mxu0 0.0
        %553 = vmatpush.msra.mxu0 0.0
        %554 = vmatpush.msra.mxu0 0.0
        %555 = vmatpush.msra.mxu0 0.0
        %556 = vmatpush.msra.mxu0 0.0
        %557 = vmatpush.msra.mxu0 0.0
        %558 = vmatpush.msra.mxu0 0.0
        %559 = vmatpush.msra.mxu0 0.0
        %560 = vmatpush.msra.mxu0 0.0
        %561 = vmatpush.msra.mxu0 0.0
        %562 = vmatpush.msra.mxu0 0.0
        %563 = vmatpush.msra.mxu0 0.0
        %564 = vmatpush.msra.mxu0 %v544
        %565 = vmatpush.msra.mxu0 %v543
        %566 = vmatpush.msra.mxu0 %v542
        %567 = vmatpush.msra.mxu0 %v541
        %568 = vmatmul.f32.gmra.mxu0 %v550
        %v569 = vpop.f32.mrf.mxu0
        %v570 = vadd.f32 %v547, %v569
        %571 = vdwg.mxu0
        %572 = vmatpush.xpose.msra.mxu0 0.0
        %573 = vmatpush.xpose.msra.mxu0 0.0
        %574 = vmatpush.xpose.msra.mxu0 0.0
        %575 = vmatpush.xpose.msra.mxu0 0.0
        %576 = vmatpush.xpose.msra.mxu0 0.0
        %577 = vmatpush.xpose.msra.mxu0 0.0
        %578 = vmatpush.xpose.msra.mxu0 0.0
        %579 = vmatpush.xpose.msra.mxu0 0.0
        %580 = vmatpush.xpose.msra.mxu0 0.0
        %581 = vmatpush.xpose.msra.mxu0 0.0
        %582 = vmatpush.xpose.msra.mxu0 0.0
        %583 = vmatpush.xpose.msra.mxu0 0.0
        %584 = vmatpush.xpose.msra.mxu0 0.0
        %585 = vmatpush.xpose.msra.mxu0 0.0
        %586 = vmatpush.xpose.msra.mxu0 0.0
        %587 = vmatpush.xpose.msra.mxu0 %v538
        %588 = vmatmul.f32.gmra.mxu0 %v506
        %v589 = vpop.f32.mrf.mxu0
        %v590 = vadd.f32 0.0, %v589
        %591 = vdwg.mxu0
        %vm592 = vcmask 64512
        %v593 = vsel %vm592, %v590, -inf
        %v594 = vrot.slane %v593, 4
        %v595 = vmax.f32 %v593, %v594
        %v596 = vrot.slane %v595, 2
        %v597 = vmax.f32 %v595, %v596
        %v598 = vrot.slane %v597, 1
        %v599 = vmax.f32 %v597, %v598
        %v600 = vsub.f32 %v590, %v599
        %v601 = vmul.f32 %v600, 1.442695
        %v602 = vpow.pop %v601
        %v603 = vsel %vm592, %v602, 0.0
        %v604 = vrot.slane %v603, 4
        %v605 = vadd.f32 %v603, %v604
        %v606 = vrot.slane %v605, 2
        %v607 = vadd.f32 %v605, %v606
        %v608 = vrot.slane %v607, 1
        %v609 = vadd.f32 %v607, %v608
        %v610 = vrcp.pop %v609
        %v611 = vmul.f32 %v609, %v610
        %v612 = vsub.f32 1.0, %v611
        %v613 = vmul.f32 %v610, %v612
        %v614 = vadd.f32 %v610, %v613
        %vm615 = vweird.f32 %v609
        %vm616 = vweird.f32 %v610
        %vm617 = vmor %vm615, %vm616
        %v618 = vsel %vm617, %v610, %v614
        %v619 = vand.u32 2147483647, %v609
        %vm620 = vcmp.eq.f32.partialorder %v619, 8.507059e+37
        %v621 = vand.u32 %v609, 2147483648
        %v622 = vor.u32 1.1754944e-38, %v621
        %v623 = vsel %vm620, %v622, %v618
        %v624 = vmul.f32 1.0, %v623
        %v625 = vmul.f32 %v602, %v624
        %v627 = vsel %vm592, %v625, 0
        %629 = vmatpush.msra.mxu0 0.0
        %630 = vmatpush.msra.mxu0 0.0
        %631 = vmatpush.msra.mxu0 0.0
        %632 = vmatpush.msra.mxu0 0.0
        %633 = vmatpush.msra.mxu0 0.0
        %634 = vmatpush.msra.mxu0 0.0
        %635 = vmatpush.msra.mxu0 0.0
        %636 = vmatpush.msra.mxu0 0.0
        %637 = vmatpush.msra.mxu0 0.0
        %638 = vmatpush.msra.mxu0 0.0
        %639 = vmatpush.msra.mxu0 0.0
        %640 = vmatpush.msra.mxu0 0.0
        %641 = vmatpush.msra.mxu0 0.0
        %642 = vmatpush.msra.mxu0 0.0
        %643 = vmatpush.msra.mxu0 0.0
        %644 = vmatpush.msra.mxu0 %v570
        %645 = vmatmul.f32.gmra.mxu0 %v627
        %v646 = vpop.f32.mrf.mxu0
        %v647 = vadd.f32 0.0, %v646
        %648 = vdwg.mxu0
        %vm649 = vcmask 130048
        %650 = vst.msk [vmem:[%s474] sm:$0xff] %vm649, %v647
        %s651 = sand.u32 %s243, 1
        %s652 = scalar_lea.sflag [#allocation4], %s651
        %s653 = sand.u32 %s243, 1
        %s654 = smul.addr %s653, 8
        %s655 = scalar_lea.vmem [#allocation13], %s654
        // Predicated region
        $region81: #{tpu_custom_call.1} parent=55 // pred_check
          %p656 = pneg %p253
        $region82: #{tpu_custom_call.1} parent=55 // pred_check_branch
          %658 = sbr.rel (%p656) target = $region84
        $region83: #{tpu_custom_call.1} parent=55 // pred_region
          %660 = vsyncadd %s652, 0
          %s661 = smul.addr %s31, 8
          %s662 = scalar_lea.hbm %s9, %s661
          %s664 = sshll.u32 %s655, 4
          %s665 = int_to_ptr.vmem [resolvable:$true] %s664
          %s666 = sshll.u32 %s662, 4
          %s667 = int_to_ptr.hbm [resolvable:$true] %s666
          %669 = dma.vmem_to_hbm [thread:$0]  %s665, 128, %s667, %s652
        $region84: #{tpu_custom_call.1} parent=55 // pred_fallthru
          _
      $region56: #{tpu_custom_call.1} parent=5 // pred_fallthru
        _
      %p670 = scmp.le.s32.totalorder 2, %s26
      // Predicated region
      $region85: #{tpu_custom_call.1} parent=5 // pred_check
        %p671 = pneg %p670
      $region86: #{tpu_custom_call.1} parent=5 // pred_check_branch
        %673 = sbr.rel (%p671) target = $region88
      $region87: #{tpu_custom_call.1} parent=5 // pred_region
        %s674 = ssub.s32 %s26, 2
        // Predicated region
        $region89: #{tpu_custom_call.1} parent=87 // pred_check
          %p675 = pneg %p259
        $region90: #{tpu_custom_call.1} parent=87 // pred_check_branch
          %677 = sbr.rel (%p675) target = $region92
        $region91: #{tpu_custom_call.1} parent=87 // pred_region
          %s678 = sand.u32 %s244, 1
          %s679 = scalar_lea.sflag [#allocation4], %s678
          %s680 = sand.u32 %s244, 1
          %s681 = smul.addr %s680, 8
          %s682 = scalar_lea.vmem [#allocation13], %s681
          %684 = dma.done %s679, 128
        $region92: #{tpu_custom_call.1} parent=87 // pred_fallthru
          _
      $region88: #{tpu_custom_call.1} parent=5 // pred_fallthru
        _
    $region6: #{tpu_custom_call.1} parent=1 // loop_footer
      %s30 = sadd.s32 1, %s26
    $region7: #{tpu_custom_call.1} parent=1 // loop_footer_branch
      %25 = sbr.rel target = $region3
    $region8: #{tpu_custom_call.1} parent=1 // loop_exit
      _
    %685 = vsyncpa [#allocation3], 1
    %s686 = scalar_lea.sflag [#allocation3], 1
    %687 = vsyncpa %s686, 1
    %688 = vsyncpa [#allocation6], 1
    %s689 = scalar_lea.sflag [#allocation6], 1
    %690 = vsyncpa %s689, 1
    %691 = vsyncpa [#allocation9], 1
    %692 = vsyncpa [#allocation12], 1
    %693 = vsyncpa [#allocation4], 1
    %s694 = scalar_lea.sflag [#allocation4], 1
    %695 = vsyncpa %s694, 1

</llo_original>
